<compile_context>
chip_gen: v5e
topology: v5e:2x2
jax: 0.10.0
libtpu: 0.0.40
codegen_flags: <defaults>
</compile_context>

<pallas_src>
import functools
import math

import jax
import jax.numpy as jnp
from jax.experimental import pallas as pl
from jax.experimental.pallas import tpu as pltpu


def _add_kernel(x_ref, b_ref, o_ref):
    # Single VPU broadcast add; the kernel is HBM-bound, not compute-bound.
    o_ref[...] = x_ref[...] + b_ref[...]


@functools.lru_cache(maxsize=1)
def _tile_target_bytes():
    """Per-generation x-tile byte target.  4 double-buffered tiles (x in/out)
    must fit the default scoped VMEM (16 MiB v5e, 32 MiB v6e/v7x)."""
    try:
        kind = jax.devices()[0].device_kind.lower()
    except Exception:
        return 2 * 1024 * 1024
    if "7x" in kind or "v7" in kind:
        return 6 * 1024 * 1024   # 24 MiB of buffers; amortizes step overhead on 3.2 TB/s HBM
    if "v6" in kind:
        return 4 * 1024 * 1024   # 16 MiB of buffers; ~86%+ of measured roofline
    if "v5e" in kind or "v5 lite" in kind or "v5lite" in kind:
        return 3 * 1024 * 1024   # 12 MiB of buffers < 16 MiB scoped default
    return 2 * 1024 * 1024       # conservative default for unknown chips


def _sublane(dtype):
    """Native packed sublane count per vreg: 8 (f32), 16 (bf16), 32 (int8/fp8)."""
    return max(8, 32 // max(jnp.dtype(dtype).itemsize, 1))


def _row_tile(rows, row_bytes, align, target_bytes):
    """Rows per grid step: a multiple of `align`, ~target_bytes, and at least
    2 grid steps whenever the row count allows (so both v7x TCs get work)."""
    tm = max(target_bytes // max(row_bytes, 1), 1)
    tm = max((tm // align) * align, align)
    if tm >= rows:
        if rows < 2 * align:
            return rows, 1
        half = (rows + 1) // 2
        tm = -(-half // align) * align      # ceil -> exactly 2 steps
    return tm, pl.cdiv(rows, tm)


def _tiled_add_lane_bias(x, bias_row, target_bytes):
    """x: (R, L); adds bias_row (L,) to every row (bias varies along lanes)."""
    R, L = x.shape
    # NOTE: bias is cast to x.dtype before the add; for bf16 x + f32 bias this
    # differs slightly from PyTorch's promote-then-add (acceptable here).
    b = bias_row.astype(x.dtype).reshape(1, L)
    sub = _sublane(x.dtype)
    tm, steps = _row_tile(R, L * x.dtype.itemsize, sub, target_bytes)
    return pl.pallas_call(
        _add_kernel,
        out_shape=jax.ShapeDtypeStruct((R, L), x.dtype),
        grid=(steps,),
        in_specs=[
            pl.BlockSpec((tm, L), lambda i: (i, 0)),
            pl.BlockSpec((1, L), lambda i: (0, 0)),   # bias resident, fetched once
        ],
        out_specs=pl.BlockSpec((tm, L), lambda i: (i, 0)),
        compiler_params=pltpu.CompilerParams(
            dimension_semantics=("parallel",)),
    )(x, b)


def add_bias_2d(x, bias_c, target_bytes=None):
    """x: (N, C) -> x + bias_c[None, :]."""
    N, C = x.shape
    if target_bytes is None:
        target_bytes = _tile_target_bytes()
    if C % 128 != 0:
        # Fold rows into the lane dim so loads/stores use full 128-lane vregs
        # (a plain (N, 4) layout uses only 4/128 lanes per masked store).
        k = 128 // math.gcd(C, 128)          # smallest k with (k * C) % 128 == 0
        if k > 1:
            if N % k == 0:
                pad = 0
                while N % (2 * k) == 0 and 2 * k * C <= 1024:
                    k *= 2                   # widen folded rows while it stays cheap
            else:
                pad = (-N) % k               # cheap one-time row pad, sliced off below
            xs = jnp.pad(x, ((0, pad), (0, 0))) if pad else x
            folded = _tiled_add_lane_bias(
                xs.reshape((N + pad) // k, k * C), jnp.tile(bias_c, k), target_bytes)
            out = folded.reshape(N + pad, C)
            return out[:N] if pad else out
    return _tiled_add_lane_bias(x, bias_c, target_bytes)


def add_bias_4d(x, bias_c, target_bytes=None):
    """x: (N, C, H, W) NCHW -> x + bias_c[None, :, None, None]."""
    N, C, H, W = x.shape
    HW = H * W
    R = N * C
    itemsize = x.dtype.itemsize
    if target_bytes is None:
        target_bytes = _tile_target_bytes()
    sub = _sublane(x.dtype)
    xf = x.reshape(R, HW)                    # free reshape; lane dim = H*W

    if HW % 128 != 0:
        # Lane-dense fold for HW not 128-aligned (7x7, 14x14, ...): fold k rows
        # so the lane dim becomes a multiple of 128.  k is also a multiple of C
        # so the per-folded-row bias pattern is identical for every folded row.
        k0 = 128 // math.gcd(HW, 128)
        k = (k0 * C) // math.gcd(k0, C)      # lcm(k0, C)
        if R % k == 0 and k * HW * itemsize * sub <= target_bytes:
            lane_bias = jnp.tile(jnp.repeat(bias_c, HW), k // C)   # (k*HW,)
            out = _tiled_add_lane_bias(xf.reshape(R // k, k * HW),
                                       lane_bias, target_bytes)
            return out.reshape(N, C, H, W)

    # Row-bias path: bias constant along lanes.  Full (R, 1) bias column is
    # materialized once and sliced per step with its own BlockSpec, so the row
    # tile is chosen purely by bytes (no lcm(8, C) alignment constraint).
    bias_col = jnp.tile(bias_c.astype(x.dtype), N).reshape(R, 1)   # row r -> bias_c[r % C]
    row_bytes = HW * itemsize

    if row_bytes * sub > target_bytes and HW > 128:
        # Huge feature maps: add a lane grid axis so tiles stay inside VMEM.
        tm = sub if R >= sub else R
        tl = max((target_bytes // (tm * itemsize) // 128) * 128, 128)
        if tl >= HW:
            tl = HW
        grid = (pl.cdiv(R, tm), pl.cdiv(HW, tl))
        x_spec = pl.BlockSpec((tm, tl), lambda i, j: (i, j))
        b_spec = pl.BlockSpec((tm, 1), lambda i, j: (i, 0))
        o_spec = pl.BlockSpec((tm, tl), lambda i, j: (i, j))
        dims = ("parallel", "parallel")
    else:
        tm, steps = _row_tile(R, row_bytes, sub, target_bytes)
        grid = (steps,)
        x_spec = pl.BlockSpec((tm, HW), lambda i: (i, 0))
        b_spec = pl.BlockSpec((tm, 1), lambda i: (i, 0))
        o_spec = pl.BlockSpec((tm, HW), lambda i: (i, 0))
        dims = ("parallel",)

    out = pl.pallas_call(
        _add_kernel,
        out_shape=jax.ShapeDtypeStruct((R, HW), x.dtype),
        grid=grid,
        in_specs=[x_spec, b_spec],
        out_specs=o_spec,
        compiler_params=pltpu.CompilerParams(dimension_semantics=dims),
    )(xf, bias_col)
    return out.reshape(N, C, H, W)


def add_bias(x, bias_c):
    """Mirrors AddBias.forward; bias_c is the (C,) vector given to __init__."""
    if x.ndim == 2:
        return add_bias_2d(x, bias_c)
    if x.ndim == 4:
        return add_bias_4d(x, bias_c)
    raise ValueError("AddBias only supports 2D or 4D inputs")


if __name__ == "__main__":
    key = jax.random.PRNGKey(0)
    (k_bias, k_x4, k_x4b, k_x4c, k_x4d, k_x4e,
     k_x2, k_x2b, k_x2c) = jax.random.split(key, 9)

    C = 4
    bias_c = jax.random.normal(k_bias, (C,), dtype=jnp.float32)

    # 4D path (NCHW), HW 128-aligned, small grid.
    x4 = jax.random.normal(k_x4, (2, C, 16, 16), dtype=jnp.float32)
    out4 = jax.block_until_ready(add_bias(x4, bias_c))
    ref4 = x4 + bias_c.reshape(1, C, 1, 1)
    assert out4.shape == x4.shape and out4.dtype == x4.dtype
    assert jnp.allclose(out4, ref4, atol=1e-6), "4D mismatch"

    # 4D path, multi-step row grid with a ragged last tile (tiny tile budget).
    x4b = jax.random.normal(k_x4b, (3, C, 16, 16), dtype=jnp.float32)
    out4b = jax.block_until_ready(add_bias_4d(x4b, bias_c, target_bytes=8 * 1024))
    ref4b = x4b + bias_c.reshape(1, C, 1, 1)
    assert jnp.allclose(out4b, ref4b, atol=1e-6), "4D tiled mismatch"

    # 4D path, lane-tiled 2-D grid (row tile alone would exceed the budget).
    x4c = jax.random.normal(k_x4c, (2, C, 16, 16), dtype=jnp.float32)
    out4c = jax.block_until_ready(add_bias_4d(x4c, bias_c, target_bytes=4 * 1024))
    ref4c = x4c + bias_c.reshape(1, C, 1, 1)
    assert jnp.allclose(out4c, ref4c, atol=1e-6), "4D lane-tiled mismatch"

    # 4D path, HW % 128 != 0 (7x7 feature map) -> lane-dense fold.
    x4d = jax.random.normal(k_x4d, (32, C, 7, 7), dtype=jnp.float32)
    out4d = jax.block_until_ready(add_bias(x4d, bias_c))
    ref4d = x4d + bias_c.reshape(1, C, 1, 1)
    assert jnp.allclose(out4d, ref4d, atol=1e-6), "4D folded mismatch"

    # 4D path, bf16 input (dtype-aware sublane alignment; bias cast to bf16).
    x4e = jax.random.normal(k_x4e, (2, C, 16, 16), dtype=jnp.bfloat16)
    out4e = jax.block_until_ready(add_bias(x4e, bias_c))
    ref4e = x4e + bias_c.astype(jnp.bfloat16).reshape(1, C, 1, 1)
    assert out4e.dtype == jnp.bfloat16
    assert jnp.allclose(out4e.astype(jnp.float32), ref4e.astype(jnp.float32),
                        atol=1e-2, rtol=1e-2), "4D bf16 mismatch"

    # 2D path, tiny N (lane fold via row pad).
    x2 = jax.random.normal(k_x2, (2, C), dtype=jnp.float32)
    out2 = jax.block_until_ready(add_bias(x2, bias_c))
    ref2 = x2 + bias_c.reshape(1, C)
    assert out2.shape == x2.shape and out2.dtype == x2.dtype
    assert jnp.allclose(out2, ref2, atol=1e-6), "2D mismatch"

    # 2D path, row count that folds without padding (rows folded to 256 lanes).
    x2b = jax.random.normal(k_x2b, (64, C), dtype=jnp.float32)
    out2b = jax.block_until_ready(add_bias(x2b, bias_c))
    ref2b = x2b + bias_c.reshape(1, C)
    assert jnp.allclose(out2b, ref2b, atol=1e-6), "2D folded mismatch"

    # 2D path, N not a multiple of the fold factor (padded fold + slice).
    x2c = jax.random.normal(k_x2c, (20, C), dtype=jnp.float32)
    out2c = jax.block_until_ready(add_bias_2d(x2c, bias_c, target_bytes=64))
    ref2c = x2c + bias_c.reshape(1, C)
    assert jnp.allclose(out2c, ref2c, atol=1e-6), "2D padded-fold mismatch"

    print("KERNEL_OK")
</pallas_src>

<mosaic_0001>
module attributes {stable_mosaic.version = 11 : i64} {
  func.func @_add_kernel(%arg0: i32, %arg1: memref<8x256xf32, #tpu.memory_space<vmem>>, %arg2: memref<8x1xf32, #tpu.memory_space<vmem>>, %arg3: memref<8x256xf32, #tpu.memory_space<vmem>>) attributes {dimension_semantics = [#tpu.dimension_semantics<parallel>], iteration_bounds = array<i64: 1>, scalar_prefetch = 0 : i64, scratch_operands = 0 : i64, tpu.core_type = #tpu.core_type<tc>, window_params = [{transform_indices = @transform_0, window_bounds = array<i64: 8, 256>}, {transform_indices = @transform_1, window_bounds = array<i64: 8, 1>}, {transform_indices = @transform_2, window_bounds = array<i64: 8, 256>}]} {
    %c0 = arith.constant 0 : index
    %c0_0 = arith.constant 0 : index
    %0 = vector.load %arg1[%c0, %c0_0] : memref<8x256xf32, #tpu.memory_space<vmem>>, vector<8x256xf32>
    %c0_1 = arith.constant 0 : index
    %c0_2 = arith.constant 0 : index
    %1 = vector.load %arg2[%c0_1, %c0_2] : memref<8x1xf32, #tpu.memory_space<vmem>>, vector<8x1xf32>
    %2 = vector.broadcast %1 : vector<8x1xf32> to vector<8x256xf32>
    %3 = arith.addf %0, %2 : vector<8x256xf32>
    %c0_3 = arith.constant 0 : index
    %c0_4 = arith.constant 0 : index
    %4 = vector.load %arg3[%c0_3, %c0_4] : memref<8x256xf32, #tpu.memory_space<vmem>>, vector<8x256xf32>
    tpu.vector_store %arg3[%c0_3, %c0_4], %3 {strides = array<i32>} : memref<8x256xf32, #tpu.memory_space<vmem>>, vector<8x256xf32>,
    return
  }
  func.func @transform_0(%arg0: i32) -> (i32, i32) {
    %c0_i32 = arith.constant 0 : i32
    %c0_i32_0 = arith.constant 0 : i32
    return %arg0, %c0_i32 : i32, i32
  }
  func.func @transform_1(%arg0: i32) -> (i32, i32) {
    %c0_i32 = arith.constant 0 : i32
    %c0_i32_0 = arith.constant 0 : i32
    return %arg0, %c0_i32 : i32, i32
  }
  func.func @transform_2(%arg0: i32) -> (i32, i32) {
    %c0_i32 = arith.constant 0 : i32
    %c0_i32_0 = arith.constant 0 : i32
    return %arg0, %c0_i32 : i32, i32
  }
}

</mosaic_0001>

<llo_original>
// kernel: tpu_custom_call.1
$region0: #{tpu_custom_call.1}
  #allocation0 [shape = 'u32[]', space=smem, size = 0x4, offset = 0x4, fixed_abs, tag = 'smem constant byte address 0x4 - core index']
  #allocation1 [shape = 'u32[72,128]{1,0:T(1,128)}', space=vmem, size = 0x9000, scoped, tag = 'internal scratch']
  %s0 = inlined_call_operand.hbm [shape: f32[8,256], index: 0, kind: input, shape index: {}]
  %s1 = inlined_call_operand.vmem [shape: f32[8,1], index: 1, kind: input, shape index: {}]
  %s2 = inlined_call_operand.hbm [shape: f32[8,256], index: 2, kind: output, shape index: {}]
  %s3 = sld [smem:[#allocation0]]
  $region22: #{tpu_custom_call.1} parent=0
    _
  %s5 = ssub.s32 1, %s3
  %s6 = scalar_select 0, %s5, %s3
  $region1: #{tpu_custom_call.1} parent=0
    #allocation2 [shape = 'u8[8192]{0}', space=vmem, size = 0x2000, scoped, tag = 'input window, operand 0, single buffered']
    #allocation3 [shape = 's32[1]{0}', space=sflag, size = 0x4, scoped, tag = 'scoped memory for tpu_custom_call.1']
    #allocation4 [shape = 's32[1]{0}', space=sflag, size = 0x4, scoped, tag = 'scoped memory for tpu_custom_call.1']
    #allocation5 [shape = 'u8[8192]{0}', space=vmem, size = 0x2000, scoped, tag = 'output window, operand 0, single buffered']
    %7 = vsyncpa [#allocation3], 0
    %8 = vsyncpa [#allocation4], 0
    // Predicated region
    $region2: #{tpu_custom_call.1} parent=1 // pred_check
      _
    $region3: #{tpu_custom_call.1} parent=1 // pred_check_branch
      %10 = sbr.rel (0) target = $region5
    $region4: #{tpu_custom_call.1} parent=1 // pred_region
      %12 = vsyncadd [#allocation3], 0
      %s14 = sshll.u32 %s0, 4
      %s15 = int_to_ptr.hbm [resolvable:$true] %s14
      %s16 = sshll.u32 [#allocation2], 4
      %s17 = int_to_ptr.vmem [resolvable:$true] %s16
      %19 = dma.hbm_to_vmem [thread:$0]  %s15, 256, %s17, [#allocation3]
    $region5: #{tpu_custom_call.1} parent=1 // pred_fallthru
      _
    // Predicated region
    $region6: #{tpu_custom_call.1} parent=1 // pred_check
      _
    $region7: #{tpu_custom_call.1} parent=1 // pred_check_branch
      %21 = sbr.rel (0) target = $region9
    $region8: #{tpu_custom_call.1} parent=1 // pred_region
      _
    $region9: #{tpu_custom_call.1} parent=1 // pred_fallthru
      _
    // Predicated region
    $region10: #{tpu_custom_call.1} parent=1 // pred_check
      _
    $region11: #{tpu_custom_call.1} parent=1 // pred_check_branch
      %23 = sbr.rel (0) target = $region13
    $region12: #{tpu_custom_call.1} parent=1 // pred_region
      %25 = dma.done [#allocation3], 256
    $region13: #{tpu_custom_call.1} parent=1 // pred_fallthru
      _
    %v26 = vld [vmem:[#allocation2] sm:$0xff]
    %v27 = vld [vmem:[#allocation2 + $0x8] sm:$0xff]
    %v28 = vld [vmem:[%s1] sm:$0xff]
    %30 = vset.pattern.permute.xlu0 0
    %31 = vperm.xlu0 %30, %v28
    %v32 = vpop.permute.xlu0 %31
    %v34 = vadd.f32 %v26, %v32
    %v35 = vadd.f32 %v27, %v32
    %36 = vst [vmem:[#allocation5] sm:$0xff] %v34
    %37 = vst [vmem:[#allocation5 + $0x8] sm:$0xff] %v35
    // Predicated region
    $region14: #{tpu_custom_call.1} parent=1 // pred_check
      _
    $region15: #{tpu_custom_call.1} parent=1 // pred_check_branch
      %39 = sbr.rel (0) target = $region17
    $region16: #{tpu_custom_call.1} parent=1 // pred_region
      %41 = vsyncadd [#allocation4], 0
      %s43 = sshll.u32 [#allocation5], 4
      %s44 = int_to_ptr.vmem [resolvable:$true] %s43
      %s45 = sshll.u32 %s2, 4
      %s46 = int_to_ptr.hbm [resolvable:$true] %s45
      %48 = dma.vmem_to_hbm [thread:$0]  %s44, 256, %s46, [#allocation4]
    $region17: #{tpu_custom_call.1} parent=1 // pred_fallthru
      _
    // Predicated region
    $region18: #{tpu_custom_call.1} parent=1 // pred_check
      _
    $region19: #{tpu_custom_call.1} parent=1 // pred_check_branch
      %50 = sbr.rel (0) target = $region21
    $region20: #{tpu_custom_call.1} parent=1 // pred_region
      %52 = dma.done [#allocation4], 256
    $region21: #{tpu_custom_call.1} parent=1 // pred_fallthru
      _
    %53 = vsyncpa [#allocation3], 1
    %54 = vsyncpa [#allocation4], 1

</llo_original>
